<compile_context>
chip_gen: v5e
topology: v5e:2x2
jax: 0.10.0
libtpu: 0.0.40
codegen_flags: <defaults>
</compile_context>

<pallas_src>
import math
import numpy as np
import jax
import jax.numpy as jnp
from jax.experimental import pallas as pl
from jax.experimental.pallas import tpu as pltpu

EMBED_DIM = 128
HIDDEN = 128
H2 = 64
RATIO = 0.8

_VMEM = pl.BlockSpec(memory_space=pltpu.MemorySpace.VMEM)


# ---------------------------------------------------------------- Pallas kernels ---

def _sage_pool_kernel(agg_ref, x_ref, wl_ref, wr_ref, bl_ref, wu_ref, xg_ref, s_ref):
    """Fused: SAGEConv (mean aggr) + ReLU + TopK score + score gating.

    agg_ref : [tm, 128] f32   masked mean of neighbor features
    x_ref   : [tm, 128] f32   node features
    wl/wr   : [128, 128] bf16 (pre-transposed [in, out])
    bl      : [1, 128] f32
    wu      : [1, 128] f32    w / ||w||  (TopKPooling attention vector)
    """
    h = jnp.dot(agg_ref[...].astype(jnp.bfloat16), wl_ref[...],
                preferred_element_type=jnp.float32)
    h = h + jnp.dot(x_ref[...].astype(jnp.bfloat16), wr_ref[...],
                    preferred_element_type=jnp.float32)
    h = jnp.maximum(h + bl_ref[...], 0.0)                      # relu(conv(x))
    # TopKPooling score: tanh((h . w) / ||w||)  -- VPU multiply + lane reduction.
    score = jnp.tanh(jnp.sum(h * wu_ref[...], axis=-1, keepdims=True))   # [tm, 1]
    s_ref[...] = score
    xg_ref[...] = h * score                                    # gated features


def _mlp_head_kernel(x1_ref, x2_ref, x3_ref,
                     w1_ref, b1_ref, w2_ref, b2_ref, w3_ref, b3_ref, o_ref):
    x = (x1_ref[...] + x2_ref[...] + x3_ref[...]).astype(jnp.bfloat16)
    h = jnp.dot(x, w1_ref[...], preferred_element_type=jnp.float32) + b1_ref[...]
    h = jnp.maximum(h, 0.0)
    h = jnp.dot(h.astype(jnp.bfloat16), w2_ref[...],
                preferred_element_type=jnp.float32) + b2_ref[...]
    h = jnp.maximum(h, 0.0)
    # F.dropout(p=0.5, training=False) -> identity in eval mode.
    # lin3 ([64] -> 1) as VPU multiply + lane reduction (no width-1 MXU matmul).
    logits = jnp.sum(h * w3_ref[...], axis=-1, keepdims=True) + b3_ref[...]
    o_ref[...] = 1.0 / (1.0 + jnp.exp(-logits))


# ------------------------------------------------------------- kernel wrappers ---

def sage_pool_fused(agg, x, wl, wr, bl, w_unit):
    n, d = x.shape
    tm = 128 if n % 128 == 0 else n          # n is padded to a multiple of 8
    row = lambda i: (i, 0)
    rep = lambda i: (0, 0)
    return pl.pallas_call(
        _sage_pool_kernel,
        out_shape=(jax.ShapeDtypeStruct((n, d), jnp.float32),
                   jax.ShapeDtypeStruct((n, 1), jnp.float32)),
        grid=(n // tm,),
        in_specs=[pl.BlockSpec((tm, d), row),      # agg
                  pl.BlockSpec((tm, d), row),      # x
                  pl.BlockSpec((d, d), rep),       # Wl (bf16)
                  pl.BlockSpec((d, d), rep),       # Wr (bf16)
                  pl.BlockSpec((1, d), rep),       # bl
                  pl.BlockSpec((1, d), rep)],      # w/||w||
        out_specs=(pl.BlockSpec((tm, d), row),
                   pl.BlockSpec((tm, 1), row)),
        compiler_params=pltpu.CompilerParams(dimension_semantics=("parallel",)),
    )(agg, x, wl, wr, bl, w_unit)


def mlp_head(x1, x2, x3, params):
    b_pad = x1.shape[0]
    return pl.pallas_call(
        _mlp_head_kernel,
        out_shape=jax.ShapeDtypeStruct((b_pad, 1), jnp.float32),
        in_specs=[_VMEM] * 9,
        out_specs=_VMEM,
    )(x1, x2, x3,
      params["lin1_w"], params["lin1_b"],
      params["lin2_w"], params["lin2_b"],
      params["lin3_w"], params["lin3_b"])


# -------------------------------------------------- device-side graph glue (jitted) ---

def masked_mean_agg(x, src, dst, edge_mask, num_nodes):
    """Mean of valid incoming-neighbor features per node (O(E), static shapes)."""
    w = edge_mask.astype(x.dtype)
    msg = x[src] * w[:, None]
    summed = jax.ops.segment_sum(msg, dst, num_segments=num_nodes)
    deg = jax.ops.segment_sum(w, dst, num_segments=num_nodes)
    return summed / jnp.maximum(deg, 1.0)[:, None]


def topk_keep_mask(score, valid, batch, num_segments):
    """Per-graph top-ceil(0.8*n_valid) selection as a boolean mask (static shapes)."""
    n_valid = jax.ops.segment_sum(valid.astype(jnp.float32), batch,
                                  num_segments=num_segments)
    k = jnp.ceil(jnp.float32(RATIO) * n_valid).astype(jnp.int32)   # f32 math, like torch
    idx = jnp.arange(score.shape[0], dtype=jnp.int32)
    same_graph = batch[:, None] == batch[None, :]
    better = (score[None, :] > score[:, None]) | (
        (score[None, :] == score[:, None]) & (idx[None, :] < idx[:, None]))
    rank = jnp.sum(same_graph & better & valid[None, :], axis=1)
    return valid & (rank < k[batch])


def masked_mean_pool(x, mask, batch, num_segments):
    m = mask.astype(x.dtype)
    s = jax.ops.segment_sum(x * m[:, None], batch, num_segments=num_segments)
    cnt = jax.ops.segment_sum(m, batch, num_segments=num_segments)
    return s / jnp.maximum(cnt, 1.0)[:, None]


# ------------------------------------------------------------------ forward (jit) ---

def make_forward(num_graphs, num_graphs_padded):
    @jax.jit
    def forward(params, item_ids, src, dst, batch, node_valid):
        x = params["embedding"][item_ids]            # Embedding(x).squeeze(1) -> [N, 128]
        valid = node_valid
        edge_mask = valid[src] & valid[dst]

        pooled = []
        for i in (1, 2, 3):
            agg = masked_mean_agg(x, src, dst, edge_mask, x.shape[0])
            w = params[f"pool{i}_w"]
            w_unit = (w / jnp.linalg.norm(w)).reshape(1, -1).astype(jnp.float32)
            xg, score = sage_pool_fused(agg, x,
                                        params[f"conv{i}_wl"], params[f"conv{i}_wr"],
                                        params[f"conv{i}_bl"], w_unit)
            keep = topk_keep_mask(score[:, 0], valid, batch, num_graphs_padded)
            edge_mask = edge_mask & keep[src] & keep[dst]
            valid = keep
            x = xg
            pooled.append(masked_mean_pool(xg, valid, batch, num_graphs_padded))

        out = mlp_head(pooled[0], pooled[1], pooled[2], params)   # [B_pad, 1]
        return out[:num_graphs, 0]                                # .squeeze(1)
    return forward


# ------------------------------------------------------------------ parameters ---

def init_params(key, num_items):
    keys = iter(jax.random.split(key, 24))

    def nxt():
        return next(keys)

    def uniform(shape, bound):
        return jax.random.uniform(nxt(), shape, jnp.float32, -bound, bound)

    p = {}
    p["embedding"] = jax.random.normal(nxt(), (num_items, EMBED_DIM), jnp.float32)
    bnd = 1.0 / math.sqrt(EMBED_DIM)
    for i in (1, 2, 3):
        p[f"conv{i}_wl"] = uniform((EMBED_DIM, HIDDEN), bnd).astype(jnp.bfloat16)
        p[f"conv{i}_bl"] = uniform((1, HIDDEN), bnd)
        p[f"conv{i}_wr"] = uniform((EMBED_DIM, HIDDEN), bnd).astype(jnp.bfloat16)  # no bias
        p[f"pool{i}_w"] = uniform((HIDDEN,), 1.0)
    p["lin1_w"] = uniform((HIDDEN, HIDDEN), 1.0 / math.sqrt(HIDDEN)).astype(jnp.bfloat16)
    p["lin1_b"] = uniform((1, HIDDEN), 1.0 / math.sqrt(HIDDEN))
    p["lin2_w"] = uniform((HIDDEN, H2), 1.0 / math.sqrt(HIDDEN)).astype(jnp.bfloat16)
    p["lin2_b"] = uniform((1, H2), 1.0 / math.sqrt(HIDDEN))
    p["lin3_w"] = uniform((1, H2), 1.0 / math.sqrt(H2))          # row form, VPU path (f32)
    p["lin3_b"] = uniform((1, 1), 1.0 / math.sqrt(H2))
    return p


# --------------------------------------------------------------------- main ---

if __name__ == "__main__":
    key = jax.random.PRNGKey(0)
    k_param, k_items = jax.random.split(key)

    num_items = 50                         # synthetic "df.item_id.max() + 10"
    params = init_params(k_param, num_items)

    # Two session graphs with 7 and 9 nodes.
    sizes = [7, 9]
    num_graphs = len(sizes)
    n_real = sum(sizes)
    n_pad = ((n_real + 7) // 8) * 8        # static padded node slab
    b_pad = ((num_graphs + 7) // 8) * 8    # graph-batch rows padded to a multiple of 8

    item_ids = np.zeros(n_pad, np.int32)
    item_ids[:n_real] = np.asarray(jax.random.randint(k_items, (n_real,), 0, num_items))
    batch = np.zeros(n_pad, np.int32)
    batch[:n_real] = np.concatenate([np.full(s, g, np.int32) for g, s in enumerate(sizes)])
    valid = np.zeros(n_pad, bool)
    valid[:n_real] = True

    # Bidirectional chain edges within each session.
    edges = []
    off = 0
    for s in sizes:
        for i in range(s - 1):
            edges.append((off + i, off + i + 1))
            edges.append((off + i + 1, off + i))
        off += s
    edges = np.asarray(edges, np.int32)
    src = jnp.asarray(edges[:, 0])
    dst = jnp.asarray(edges[:, 1])

    forward = make_forward(num_graphs, b_pad)
    out = forward(params, jnp.asarray(item_ids), src, dst,
                  jnp.asarray(batch), jnp.asarray(valid))
    out = jax.block_until_ready(out)

    assert out.shape == (num_graphs,)
    assert bool(jnp.all((out >= 0.0) & (out <= 1.0)))
    print("KERNEL_OK")
</pallas_src>

<mosaic_0001>
module attributes {stable_mosaic.version = 11 : i64} {
  func.func @_sage_pool_kernel(%arg0: i32, %arg1: memref<16x128xf32, #tpu.memory_space<vmem>>, %arg2: memref<16x128xf32, #tpu.memory_space<vmem>>, %arg3: memref<128x128xbf16, #tpu.memory_space<vmem>>, %arg4: memref<128x128xbf16, #tpu.memory_space<vmem>>, %arg5: memref<1x128xf32, #tpu.memory_space<vmem>>, %arg6: memref<1x128xf32, #tpu.memory_space<vmem>>, %arg7: memref<16x128xf32, #tpu.memory_space<vmem>>, %arg8: memref<16x1xf32, #tpu.memory_space<vmem>>) attributes {dimension_semantics = [#tpu.dimension_semantics<parallel>], iteration_bounds = array<i64: 1>, scalar_prefetch = 0 : i64, scratch_operands = 0 : i64, tpu.core_type = #tpu.core_type<tc>, window_params = [{transform_indices = @transform_0, window_bounds = array<i64: 16, 128>}, {transform_indices = @transform_1, window_bounds = array<i64: 16, 128>}, {pipeline_mode = #tpu.pipeline_mode<synchronous>, transform_indices = @transform_2, window_bounds = array<i64: 128, 128>}, {pipeline_mode = #tpu.pipeline_mode<synchronous>, transform_indices = @transform_3, window_bounds = array<i64: 128, 128>}, {pipeline_mode = #tpu.pipeline_mode<synchronous>, transform_indices = @transform_4, window_bounds = array<i64: 1, 128>}, {pipeline_mode = #tpu.pipeline_mode<synchronous>, transform_indices = @transform_5, window_bounds = array<i64: 1, 128>}, {transform_indices = @transform_6, window_bounds = array<i64: 16, 128>}, {transform_indices = @transform_7, window_bounds = array<i64: 16, 1>}]} {
    %c0 = arith.constant 0 : index
    %c0_0 = arith.constant 0 : index
    %0 = vector.load %arg1[%c0, %c0_0] : memref<16x128xf32, #tpu.memory_space<vmem>>, vector<16x128xf32>
    %1 = arith.truncf %0 : vector<16x128xf32> to vector<16x128xbf16>
    %c0_1 = arith.constant 0 : index
    %c0_2 = arith.constant 0 : index
    %2 = vector.load %arg3[%c0_1, %c0_2] : memref<128x128xbf16, #tpu.memory_space<vmem>>, vector<128x128xbf16>
    %cst = arith.constant dense<0.000000e+00> : vector<16x128xf32>
    %3 = tpu.matmul %1, %2, %cst {dimension_numbers = #tpu.dot_dimension_numbers<[1], [0], [0], [1], [0, 0, 1, 1], [], []>} : vector<16x128xbf16>, vector<128x128xbf16>, vector<16x128xf32> -> vector<16x128xf32>
    %c0_3 = arith.constant 0 : index
    %c0_4 = arith.constant 0 : index
    %4 = vector.load %arg2[%c0_3, %c0_4] : memref<16x128xf32, #tpu.memory_space<vmem>>, vector<16x128xf32>
    %5 = arith.truncf %4 : vector<16x128xf32> to vector<16x128xbf16>
    %c0_5 = arith.constant 0 : index
    %c0_6 = arith.constant 0 : index
    %6 = vector.load %arg4[%c0_5, %c0_6] : memref<128x128xbf16, #tpu.memory_space<vmem>>, vector<128x128xbf16>
    %cst_7 = arith.constant dense<0.000000e+00> : vector<16x128xf32>
    %7 = tpu.matmul %5, %6, %cst_7 {dimension_numbers = #tpu.dot_dimension_numbers<[1], [0], [0], [1], [0, 0, 1, 1], [], []>} : vector<16x128xbf16>, vector<128x128xbf16>, vector<16x128xf32> -> vector<16x128xf32>
    %8 = arith.addf %3, %7 : vector<16x128xf32>
    %c0_8 = arith.constant 0 : index
    %c0_9 = arith.constant 0 : index
    %9 = vector.load %arg5[%c0_8, %c0_9] : memref<1x128xf32, #tpu.memory_space<vmem>>, vector<1x128xf32>
    %10 = vector.broadcast %9 : vector<1x128xf32> to vector<16x128xf32>
    %11 = arith.addf %8, %10 : vector<16x128xf32>
    %cst_10 = arith.constant 0.000000e+00 : f32
    %12 = vector.broadcast %cst_10 : f32 to vector<16x128xf32>
    %13 = arith.maximumf %11, %12 : vector<16x128xf32>
    %c0_11 = arith.constant 0 : index
    %c0_12 = arith.constant 0 : index
    %14 = vector.load %arg6[%c0_11, %c0_12] : memref<1x128xf32, #tpu.memory_space<vmem>>, vector<1x128xf32>
    %15 = vector.broadcast %14 : vector<1x128xf32> to vector<16x128xf32>
    %16 = arith.mulf %13, %15 : vector<16x128xf32>
    %cst_13 = arith.constant dense<0.000000e+00> : vector<16xf32>
    %17 = vector.multi_reduction <add>, %16, %cst_13 [1] : vector<16x128xf32> to vector<16xf32>
    %18 = vector.shape_cast %17 : vector<16xf32> to vector<16x1xf32>
    %19 = math.tanh %18 : vector<16x1xf32>
    %c0_14 = arith.constant 0 : index
    %c0_15 = arith.constant 0 : index
    %20 = vector.load %arg8[%c0_14, %c0_15] : memref<16x1xf32, #tpu.memory_space<vmem>>, vector<16x1xf32>
    tpu.vector_store %arg8[%c0_14, %c0_15], %19 {strides = array<i32>} : memref<16x1xf32, #tpu.memory_space<vmem>>, vector<16x1xf32>,
    %21 = vector.broadcast %19 : vector<16x1xf32> to vector<16x128xf32>
    %22 = arith.mulf %13, %21 : vector<16x128xf32>
    %c0_16 = arith.constant 0 : index
    %c0_17 = arith.constant 0 : index
    %23 = vector.load %arg7[%c0_16, %c0_17] : memref<16x128xf32, #tpu.memory_space<vmem>>, vector<16x128xf32>
    tpu.vector_store %arg7[%c0_16, %c0_17], %22 {strides = array<i32>} : memref<16x128xf32, #tpu.memory_space<vmem>>, vector<16x128xf32>,
    return
  }
  func.func @transform_0(%arg0: i32) -> (i32, i32) {
    %c0_i32 = arith.constant 0 : i32
    %c0_i32_0 = arith.constant 0 : i32
    return %arg0, %c0_i32 : i32, i32
  }
  func.func @transform_1(%arg0: i32) -> (i32, i32) {
    %c0_i32 = arith.constant 0 : i32
    %c0_i32_0 = arith.constant 0 : i32
    return %arg0, %c0_i32 : i32, i32
  }
  func.func @transform_2(%arg0: i32) -> (i32, i32) {
    %c0_i32 = arith.constant 0 : i32
    %c0_i32_0 = arith.constant 0 : i32
    %c0_i32_1 = arith.constant 0 : i32
    return %c0_i32, %c0_i32_0 : i32, i32
  }
  func.func @transform_3(%arg0: i32) -> (i32, i32) {
    %c0_i32 = arith.constant 0 : i32
    %c0_i32_0 = arith.constant 0 : i32
    %c0_i32_1 = arith.constant 0 : i32
    return %c0_i32, %c0_i32_0 : i32, i32
  }
  func.func @transform_4(%arg0: i32) -> (i32, i32) {
    %c0_i32 = arith.constant 0 : i32
    %c0_i32_0 = arith.constant 0 : i32
    %c0_i32_1 = arith.constant 0 : i32
    return %c0_i32, %c0_i32_0 : i32, i32
  }
  func.func @transform_5(%arg0: i32) -> (i32, i32) {
    %c0_i32 = arith.constant 0 : i32
    %c0_i32_0 = arith.constant 0 : i32
    %c0_i32_1 = arith.constant 0 : i32
    return %c0_i32, %c0_i32_0 : i32, i32
  }
  func.func @transform_6(%arg0: i32) -> (i32, i32) {
    %c0_i32 = arith.constant 0 : i32
    %c0_i32_0 = arith.constant 0 : i32
    return %arg0, %c0_i32 : i32, i32
  }
  func.func @transform_7(%arg0: i32) -> (i32, i32) {
    %c0_i32 = arith.constant 0 : i32
    %c0_i32_0 = arith.constant 0 : i32
    return %arg0, %c0_i32 : i32, i32
  }
}

module attributes {stable_mosaic.version = 11 : i64} {
  func.func @_mlp_head_kernel(%arg0: memref<8x128xf32, #tpu.memory_space<vmem>>, %arg1: memref<8x128xf32, #tpu.memory_space<vmem>>, %arg2: memref<8x128xf32, #tpu.memory_space<vmem>>, %arg3: memref<128x128xbf16, #tpu.memory_space<vmem>>, %arg4: memref<1x128xf32, #tpu.memory_space<vmem>>, %arg5: memref<128x64xbf16, #tpu.memory_space<vmem>>, %arg6: memref<1x64xf32, #tpu.memory_space<vmem>>, %arg7: memref<1x64xf32, #tpu.memory_space<vmem>>, %arg8: memref<1x1xf32, #tpu.memory_space<vmem>>, %arg9: memref<8x1xf32, #tpu.memory_space<vmem>>) attributes {dimension_semantics = [], scalar_prefetch = 0 : i64, scratch_operands = 0 : i64, tpu.core_type = #tpu.core_type<tc>} {
    %c0 = arith.constant 0 : index
    %c0_0 = arith.constant 0 : index
    %0 = vector.load %arg0[%c0, %c0_0] : memref<8x128xf32, #tpu.memory_space<vmem>>, vector<8x128xf32>
    %c0_1 = arith.constant 0 : index
    %c0_2 = arith.constant 0 : index
    %1 = vector.load %arg1[%c0_1, %c0_2] : memref<8x128xf32, #tpu.memory_space<vmem>>, vector<8x128xf32>
    %2 = arith.addf %0, %1 : vector<8x128xf32>
    %c0_3 = arith.constant 0 : index
    %c0_4 = arith.constant 0 : index
    %3 = vector.load %arg2[%c0_3, %c0_4] : memref<8x128xf32, #tpu.memory_space<vmem>>, vector<8x128xf32>
    %4 = arith.addf %2, %3 : vector<8x128xf32>
    %5 = arith.truncf %4 : vector<8x128xf32> to vector<8x128xbf16>
    %c0_5 = arith.constant 0 : index
    %c0_6 = arith.constant 0 : index
    %6 = vector.load %arg3[%c0_5, %c0_6] : memref<128x128xbf16, #tpu.memory_space<vmem>>, vector<128x128xbf16>
    %cst = arith.constant dense<0.000000e+00> : vector<8x128xf32>
    %7 = tpu.matmul %5, %6, %cst {dimension_numbers = #tpu.dot_dimension_numbers<[1], [0], [0], [1], [0, 0, 1, 1], [], []>} : vector<8x128xbf16>, vector<128x128xbf16>, vector<8x128xf32> -> vector<8x128xf32>
    %c0_7 = arith.constant 0 : index
    %c0_8 = arith.constant 0 : index
    %8 = vector.load %arg4[%c0_7, %c0_8] : memref<1x128xf32, #tpu.memory_space<vmem>>, vector<1x128xf32>
    %9 = vector.broadcast %8 : vector<1x128xf32> to vector<8x128xf32>
    %10 = arith.addf %7, %9 : vector<8x128xf32>
    %cst_9 = arith.constant 0.000000e+00 : f32
    %11 = vector.broadcast %cst_9 : f32 to vector<8x128xf32>
    %12 = arith.maximumf %10, %11 : vector<8x128xf32>
    %13 = arith.truncf %12 : vector<8x128xf32> to vector<8x128xbf16>
    %c0_10 = arith.constant 0 : index
    %c0_11 = arith.constant 0 : index
    %14 = vector.load %arg5[%c0_10, %c0_11] : memref<128x64xbf16, #tpu.memory_space<vmem>>, vector<128x64xbf16>
    %cst_12 = arith.constant dense<0.000000e+00> : vector<8x64xf32>
    %15 = tpu.matmul %13, %14, %cst_12 {dimension_numbers = #tpu.dot_dimension_numbers<[1], [0], [0], [1], [0, 0, 1, 1], [], []>} : vector<8x128xbf16>, vector<128x64xbf16>, vector<8x64xf32> -> vector<8x64xf32>
    %c0_13 = arith.constant 0 : index
    %c0_14 = arith.constant 0 : index
    %16 = vector.load %arg6[%c0_13, %c0_14] : memref<1x64xf32, #tpu.memory_space<vmem>>, vector<1x64xf32>
    %17 = vector.broadcast %16 : vector<1x64xf32> to vector<8x64xf32>
    %18 = arith.addf %15, %17 : vector<8x64xf32>
    %cst_15 = arith.constant 0.000000e+00 : f32
    %19 = vector.broadcast %cst_15 : f32 to vector<8x64xf32>
    %20 = arith.maximumf %18, %19 : vector<8x64xf32>
    %c0_16 = arith.constant 0 : index
    %c0_17 = arith.constant 0 : index
    %21 = vector.load %arg7[%c0_16, %c0_17] : memref<1x64xf32, #tpu.memory_space<vmem>>, vector<1x64xf32>
    %22 = vector.broadcast %21 : vector<1x64xf32> to vector<8x64xf32>
    %23 = arith.mulf %20, %22 : vector<8x64xf32>
    %cst_18 = arith.constant dense<0.000000e+00> : vector<8xf32>
    %24 = vector.multi_reduction <add>, %23, %cst_18 [1] : vector<8x64xf32> to vector<8xf32>
    %25 = vector.shape_cast %24 : vector<8xf32> to vector<8x1xf32>
    %c0_19 = arith.constant 0 : index
    %c0_20 = arith.constant 0 : index
    %26 = vector.load %arg8[%c0_19, %c0_20] : memref<1x1xf32, #tpu.memory_space<vmem>>, vector<1x1xf32>
    %27 = vector.broadcast %26 : vector<1x1xf32> to vector<8x1xf32>
    %28 = arith.addf %25, %27 : vector<8x1xf32>
    %cst_21 = arith.constant 0.000000e+00 : f32
    %29 = vector.broadcast %cst_21 : f32 to vector<8x1xf32>
    %30 = arith.subf %29, %28 : vector<8x1xf32>
    %31 = math.exp %30 : vector<8x1xf32>
    %cst_22 = arith.constant 1.000000e+00 : f32
    %32 = vector.broadcast %cst_22 : f32 to vector<8x1xf32>
    %33 = arith.addf %32, %31 : vector<8x1xf32>
    %cst_23 = arith.constant 1.000000e+00 : f32
    %34 = vector.broadcast %cst_23 : f32 to vector<8x1xf32>
    %35 = arith.divf %34, %33 : vector<8x1xf32>
    %c0_24 = arith.constant 0 : index
    %c0_25 = arith.constant 0 : index
    %36 = vector.load %arg9[%c0_24, %c0_25] : memref<8x1xf32, #tpu.memory_space<vmem>>, vector<8x1xf32>
    tpu.vector_store %arg9[%c0_24, %c0_25], %35 {strides = array<i32>} : memref<8x1xf32, #tpu.memory_space<vmem>>, vector<8x1xf32>,
    return
  }
}

</mosaic_0001>

<llo_original>
// kernel: forward.4
$region0: #{forward.4}
  #allocation0 [shape = 'u32[]', space=smem, size = 0x4, offset = 0x4, fixed_abs, tag = 'smem constant byte address 0x4 - core index']
  #allocation1 [shape = 'u32[72,128]{1,0:T(1,128)}', space=vmem, size = 0x9000, scoped, tag = 'internal scratch']
  %s0 = inlined_call_operand.vmem [shape: f32[16,128], index: 0, kind: input, shape index: {}]
  %s1 = inlined_call_operand.vmem [shape: f32[16,128], index: 1, kind: input, shape index: {}]
  %s2 = inlined_call_operand.vmem [shape: bf16[128,128], index: 2, kind: input, shape index: {}]
  %s3 = inlined_call_operand.vmem [shape: bf16[128,128], index: 3, kind: input, shape index: {}]
  %s4 = inlined_call_operand.vmem [shape: f32[1,128], index: 4, kind: input, shape index: {}]
  %s5 = inlined_call_operand.vmem [shape: f32[1,128], index: 5, kind: input, shape index: {}]
  %s6 = inlined_call_operand.vmem [shape: f32[16,128], index: 6, kind: output, shape index: {0}]
  %s7 = inlined_call_operand.vmem [shape: f32[16,1], index: 7, kind: output, shape index: {1}]
  %8 = xla_tuple %s6, %s7
  %s9 = sld [smem:[#allocation0]]
  $region42: #{forward.4} parent=0
    _
  %s11 = ssub.s32 1, %s9
  %s12 = scalar_select 0, %s11, %s9
  // Predicated region
  $region2: #{forward.4} parent=0 // pred_check
    _
  $region3: #{forward.4} parent=0 // pred_check_branch
    %14 = sbr.rel (0) target = $region5
  $region4: #{forward.4} parent=0 // pred_region
    _
  $region5: #{forward.4} parent=0 // pred_fallthru
    _
  // Predicated region
  $region6: #{forward.4} parent=0 // pred_check
    _
  $region7: #{forward.4} parent=0 // pred_check_branch
    %16 = sbr.rel (0) target = $region9
  $region8: #{forward.4} parent=0 // pred_region
    _
  $region9: #{forward.4} parent=0 // pred_fallthru
    _
  // Predicated region
  $region10: #{forward.4} parent=0 // pred_check
    _
  $region11: #{forward.4} parent=0 // pred_check_branch
    %18 = sbr.rel (0) target = $region13
  $region12: #{forward.4} parent=0 // pred_region
    _
  $region13: #{forward.4} parent=0 // pred_fallthru
    _
  // Predicated region
  $region14: #{forward.4} parent=0 // pred_check
    _
  $region15: #{forward.4} parent=0 // pred_check_branch
    %20 = sbr.rel (0) target = $region17
  $region16: #{forward.4} parent=0 // pred_region
    _
  $region17: #{forward.4} parent=0 // pred_fallthru
    _
  // Predicated region
  $region18: #{forward.4} parent=0 // pred_check
    _
  $region19: #{forward.4} parent=0 // pred_check_branch
    %22 = sbr.rel (0) target = $region21
  $region20: #{forward.4} parent=0 // pred_region
    _
  $region21: #{forward.4} parent=0 // pred_fallthru
    _
  // Predicated region
  $region22: #{forward.4} parent=0 // pred_check
    _
  $region23: #{forward.4} parent=0 // pred_check_branch
    %24 = sbr.rel (0) target = $region25
  $region24: #{forward.4} parent=0 // pred_region
    _
  $region25: #{forward.4} parent=0 // pred_fallthru
    _
  %v25 = vld [vmem:[%s0] sm:$0xff]
  %v26 = vld [vmem:[%s0 + $0x8] sm:$0xff]
  %v27 = vpack.c.bf16 %v26, %v25
  %v28 = vld [vmem:[%s2] sm:$0xf]
  %v29 = vld [vmem:[%s2 + $0x4] sm:$0xf]
  %v30 = vld [vmem:[%s2 + $0x8] sm:$0xf]
  %v31 = vld [vmem:[%s2 + $0xc] sm:$0xf]
  %v32 = vld [vmem:[%s2 + $0x10] sm:$0xf]
  %v33 = vld [vmem:[%s2 + $0x14] sm:$0xf]
  %v34 = vld [vmem:[%s2 + $0x18] sm:$0xf]
  %v35 = vld [vmem:[%s2 + $0x1c] sm:$0xf]
  %v36 = vld [vmem:[%s2 + $0x20] sm:$0xf]
  %v37 = vld [vmem:[%s2 + $0x24] sm:$0xf]
  %v38 = vld [vmem:[%s2 + $0x28] sm:$0xf]
  %v39 = vld [vmem:[%s2 + $0x2c] sm:$0xf]
  %v40 = vld [vmem:[%s2 + $0x30] sm:$0xf]
  %v41 = vld [vmem:[%s2 + $0x34] sm:$0xf]
  %v42 = vld [vmem:[%s2 + $0x38] sm:$0xf]
  %v43 = vld [vmem:[%s2 + $0x3c] sm:$0xf]
  %v44 = vld [vmem:[%s1] sm:$0xff]
  %v45 = vld [vmem:[%s1 + $0x8] sm:$0xff]
  %v46 = vpack.c.bf16 %v45, %v44
  %v47 = vld [vmem:[%s3] sm:$0xf]
  %v48 = vld [vmem:[%s3 + $0x4] sm:$0xf]
  %v49 = vld [vmem:[%s3 + $0x8] sm:$0xf]
  %v50 = vld [vmem:[%s3 + $0xc] sm:$0xf]
  %v51 = vld [vmem:[%s3 + $0x10] sm:$0xf]
  %v52 = vld [vmem:[%s3 + $0x14] sm:$0xf]
  %v53 = vld [vmem:[%s3 + $0x18] sm:$0xf]
  %v54 = vld [vmem:[%s3 + $0x1c] sm:$0xf]
  %v55 = vld [vmem:[%s3 + $0x20] sm:$0xf]
  %v56 = vld [vmem:[%s3 + $0x24] sm:$0xf]
  %v57 = vld [vmem:[%s3 + $0x28] sm:$0xf]
  %v58 = vld [vmem:[%s3 + $0x2c] sm:$0xf]
  %v59 = vld [vmem:[%s3 + $0x30] sm:$0xf]
  %v60 = vld [vmem:[%s3 + $0x34] sm:$0xf]
  %v61 = vld [vmem:[%s3 + $0x38] sm:$0xf]
  %v62 = vld [vmem:[%s3 + $0x3c] sm:$0xf]
  %v79 = vunpack.c.l.b16 %v47
  %v80 = vunpack.c.l.b16 %v48
  %v81 = vunpack.c.l.b16 %v49
  %v82 = vunpack.c.l.b16 %v50
  %v83 = vunpack.c.l.b16 %v51
  %v84 = vunpack.c.l.b16 %v52
  %v85 = vunpack.c.l.b16 %v53
  %v86 = vunpack.c.l.b16 %v54
  %v87 = vunpack.c.l.b16 %v55
  %v88 = vunpack.c.l.b16 %v56
  %v89 = vunpack.c.l.b16 %v57
  %v90 = vunpack.c.l.b16 %v58
  %v91 = vunpack.c.l.b16 %v59
  %v92 = vunpack.c.l.b16 %v60
  %v93 = vunpack.c.l.b16 %v61
  %v94 = vunpack.c.l.b16 %v62
  %v95 = vpack.c.b16 %v80, %v79
  %v96 = vpack.c.b16 %v82, %v81
  %v97 = vpack.c.b16 %v84, %v83
  %v98 = vpack.c.b16 %v86, %v85
  %v99 = vpack.c.b16 %v88, %v87
  %v100 = vpack.c.b16 %v90, %v89
  %v101 = vpack.c.b16 %v92, %v91
  %v102 = vpack.c.b16 %v94, %v93
  %111 = vmatpush.bf16.msra.mxu0 %v102
  %112 = vmatpush.bf16.msra.mxu0 %v101
  %113 = vmatpush.bf16.msra.mxu0 %v100
  %114 = vmatpush.bf16.msra.mxu0 %v99
  %115 = vmatpush.bf16.msra.mxu0 %v98
  %116 = vmatpush.bf16.msra.mxu0 %v97
  %117 = vmatpush.bf16.msra.mxu0 %v96
  %118 = vmatpush.bf16.msra.mxu0 %v95
  %119 = vmatmul.bf16.gmra.mxu0 %v46
  %v120 = vpop.f32.mrf.mxu0
  %v121 = vadd.f32 0.0, %v120
  %v122 = vpop.f32.mrf.mxu0
  %v123 = vadd.f32 0.0, %v122
  %124 = vdwg.mxu0
  %v141 = vunpack.c.l.b16 %v28
  %v142 = vunpack.c.l.b16 %v29
  %v143 = vunpack.c.l.b16 %v30
  %v144 = vunpack.c.l.b16 %v31
  %v145 = vunpack.c.l.b16 %v32
  %v146 = vunpack.c.l.b16 %v33
  %v147 = vunpack.c.l.b16 %v34
  %v148 = vunpack.c.l.b16 %v35
  %v149 = vunpack.c.l.b16 %v36
  %v150 = vunpack.c.l.b16 %v37
  %v151 = vunpack.c.l.b16 %v38
  %v152 = vunpack.c.l.b16 %v39
  %v153 = vunpack.c.l.b16 %v40
  %v154 = vunpack.c.l.b16 %v41
  %v155 = vunpack.c.l.b16 %v42
  %v156 = vunpack.c.l.b16 %v43
  %v157 = vpack.c.b16 %v142, %v141
  %v158 = vpack.c.b16 %v144, %v143
  %v159 = vpack.c.b16 %v146, %v145
  %v160 = vpack.c.b16 %v148, %v147
  %v161 = vpack.c.b16 %v150, %v149
  %v162 = vpack.c.b16 %v152, %v151
  %v163 = vpack.c.b16 %v154, %v153
  %v164 = vpack.c.b16 %v156, %v155
  %173 = vmatpush.bf16.msra.mxu0 %v164
  %174 = vmatpush.bf16.msra.mxu0 %v163
  %175 = vmatpush.bf16.msra.mxu0 %v162
  %176 = vmatpush.bf16.msra.mxu0 %v161
  %177 = vmatpush.bf16.msra.mxu0 %v160
  %178 = vmatpush.bf16.msra.mxu0 %v159
  %179 = vmatpush.bf16.msra.mxu0 %v158
  %180 = vmatpush.bf16.msra.mxu0 %v157
  %181 = vmatmul.bf16.gmra.mxu0 %v27
  %v182 = vpop.f32.mrf.mxu0
  %v183 = vadd.f32 %v121, %v182
  %v184 = vpop.f32.mrf.mxu0
  %v185 = vadd.f32 %v123, %v184
  %186 = vdwg.mxu0
  %v187 = vld [vmem:[%s4] sm:$0x1]
  %v189 = vperm.slane %v187, 0
  %v191 = vadd.f32 %v183, %v189
  %v192 = vadd.f32 %v185, %v189
  %v193 = vmax.f32 %v191, 0.0
  %v194 = vmax.f32 %v192, 0.0
  %v195 = vld [vmem:[%s5] sm:$0x1]
  %v197 = vperm.slane %v195, 0
  %v199 = vmul.f32 %v193, %v197
  %v200 = vmul.f32 %v194, %v197
  %201 = vadd.xlane.f32.xlu0 %v199
  %v202 = vpop.xlane.xlu0 %201
  %203 = vadd.xlane.f32.xlu0 %v200
  %v204 = vpop.xlane.xlu0 %203
  %v205 = vtanh.pop %v202
  %v206 = vtanh.pop %v204
  %vm207 = vcmask 7168
  %208 = vst.msk [vmem:[%s7] sm:$0xff] %vm207, %v205
  %209 = vst.msk [vmem:[%s7 + $0x8] sm:$0xff] %vm207, %v206
  %v210 = vmul.f32 %v193, %v205
  %v211 = vmul.f32 %v194, %v206
  %212 = vst [vmem:[%s6] sm:$0xff] %v210
  %213 = vst [vmem:[%s6 + $0x8] sm:$0xff] %v211
  // Predicated region
  $region26: #{forward.4} parent=0 // pred_check
    _
  $region27: #{forward.4} parent=0 // pred_check_branch
    %215 = sbr.rel (0) target = $region29
  $region28: #{forward.4} parent=0 // pred_region
    _
  $region29: #{forward.4} parent=0 // pred_fallthru
    _
  // Predicated region
  $region30: #{forward.4} parent=0 // pred_check
    _
  $region31: #{forward.4} parent=0 // pred_check_branch
    %217 = sbr.rel (0) target = $region33
  $region32: #{forward.4} parent=0 // pred_region
    _
  $region33: #{forward.4} parent=0 // pred_fallthru
    _
  // Predicated region
  $region34: #{forward.4} parent=0 // pred_check
    _
  $region35: #{forward.4} parent=0 // pred_check_branch
    %219 = sbr.rel (0) target = $region37
  $region36: #{forward.4} parent=0 // pred_region
    _
  $region37: #{forward.4} parent=0 // pred_fallthru
    _
  // Predicated region
  $region38: #{forward.4} parent=0 // pred_check
    _
  $region39: #{forward.4} parent=0 // pred_check_branch
    %221 = sbr.rel (0) target = $region41
  $region40: #{forward.4} parent=0 // pred_region
    _
  $region41: #{forward.4} parent=0 // pred_fallthru
    _

// kernel: forward.7
$region0: #{forward.7}
  #allocation0 [shape = 'u32[]', space=smem, size = 0x4, offset = 0x4, fixed_abs, tag = 'smem constant byte address 0x4 - core index']
  #allocation1 [shape = 'u32[72,128]{1,0:T(1,128)}', space=vmem, size = 0x9000, scoped, tag = 'internal scratch']
  #allocation2 [shape = 'f32[1,1]{1,0:T(1,128)S(1)}', space=vmem, size = 0x200, scoped, tag = 'scoped memory for forward.7']
  %s0 = inlined_call_operand.vmem [shape: f32[8,128], index: 0, kind: input, shape index: {}]
  %s1 = inlined_call_operand.vmem [shape: f32[8,128], index: 1, kind: input, shape index: {}]
  %s2 = inlined_call_operand.vmem [shape: f32[8,128], index: 2, kind: input, shape index: {}]
  %s3 = inlined_call_operand.vmem [shape: bf16[128,128], index: 3, kind: input, shape index: {}]
  %s4 = inlined_call_operand.vmem [shape: f32[1,128], index: 4, kind: input, shape index: {}]
  %s5 = inlined_call_operand.vmem [shape: bf16[128,64], index: 5, kind: input, shape index: {}]
  %s6 = inlined_call_operand.vmem [shape: f32[1,64], index: 6, kind: input, shape index: {}]
  %s7 = inlined_call_operand.vmem [shape: f32[1,64], index: 7, kind: input, shape index: {}]
  %s8 = inlined_call_operand.<no memory space> [shape: f32[1,1], index: 8, kind: input, shape index: {}]
  %s9 = inlined_call_operand.vmem [shape: f32[8,1], index: 9, kind: output, shape index: {}]
  %s10 = sld [smem:[#allocation0]]
  $region46: #{forward.7} parent=0
    _
  %s12 = ssub.s32 1, %s10
  %s13 = scalar_select 0, %s12, %s10
  %v14 = vstv %s8
  %15 = vst [vmem:[#allocation2] sm:$0x1] %v14
  // Predicated region
  $region2: #{forward.7} parent=0 // pred_check
    _
  $region3: #{forward.7} parent=0 // pred_check_branch
    %17 = sbr.rel (0) target = $region5
  $region4: #{forward.7} parent=0 // pred_region
    _
  $region5: #{forward.7} parent=0 // pred_fallthru
    _
  // Predicated region
  $region6: #{forward.7} parent=0 // pred_check
    _
  $region7: #{forward.7} parent=0 // pred_check_branch
    %19 = sbr.rel (0) target = $region9
  $region8: #{forward.7} parent=0 // pred_region
    _
  $region9: #{forward.7} parent=0 // pred_fallthru
    _
  // Predicated region
  $region10: #{forward.7} parent=0 // pred_check
    _
  $region11: #{forward.7} parent=0 // pred_check_branch
    %21 = sbr.rel (0) target = $region13
  $region12: #{forward.7} parent=0 // pred_region
    _
  $region13: #{forward.7} parent=0 // pred_fallthru
    _
  // Predicated region
  $region14: #{forward.7} parent=0 // pred_check
    _
  $region15: #{forward.7} parent=0 // pred_check_branch
    %23 = sbr.rel (0) target = $region17
  $region16: #{forward.7} parent=0 // pred_region
    _
  $region17: #{forward.7} parent=0 // pred_fallthru
    _
  // Predicated region
  $region18: #{forward.7} parent=0 // pred_check
    _
  $region19: #{forward.7} parent=0 // pred_check_branch
    %25 = sbr.rel (0) target = $region21
  $region20: #{forward.7} parent=0 // pred_region
    _
  $region21: #{forward.7} parent=0 // pred_fallthru
    _
  // Predicated region
  $region22: #{forward.7} parent=0 // pred_check
    _
  $region23: #{forward.7} parent=0 // pred_check_branch
    %27 = sbr.rel (0) target = $region25
  $region24: #{forward.7} parent=0 // pred_region
    _
  $region25: #{forward.7} parent=0 // pred_fallthru
    _
  // Predicated region
  $region26: #{forward.7} parent=0 // pred_check
    _
  $region27: #{forward.7} parent=0 // pred_check_branch
    %29 = sbr.rel (0) target = $region29
  $region28: #{forward.7} parent=0 // pred_region
    _
  $region29: #{forward.7} parent=0 // pred_fallthru
    _
  // Predicated region
  $region30: #{forward.7} parent=0 // pred_check
    _
  $region31: #{forward.7} parent=0 // pred_check_branch
    %31 = sbr.rel (0) target = $region33
  $region32: #{forward.7} parent=0 // pred_region
    _
  $region33: #{forward.7} parent=0 // pred_fallthru
    _
  // Predicated region
  $region34: #{forward.7} parent=0 // pred_check
    _
  $region35: #{forward.7} parent=0 // pred_check_branch
    %33 = sbr.rel (0) target = $region37
  $region36: #{forward.7} parent=0 // pred_region
    _
  $region37: #{forward.7} parent=0 // pred_fallthru
    _
  %v34 = vld [vmem:[%s0] sm:$0xff]
  %v35 = vld [vmem:[%s1] sm:$0xff]
  %v36 = vadd.f32 %v34, %v35
  %v37 = vld [vmem:[%s2] sm:$0xff]
  %v38 = vadd.f32 %v36, %v37
  %v39 = vpack.c.bf16 %v38, %v38
  %v40 = vld [vmem:[%s3] sm:$0xf]
  %v41 = vld [vmem:[%s3 + $0x4] sm:$0xf]
  %v42 = vld [vmem:[%s3 + $0x8] sm:$0xf]
  %v43 = vld [vmem:[%s3 + $0xc] sm:$0xf]
  %v44 = vld [vmem:[%s3 + $0x10] sm:$0xf]
  %v45 = vld [vmem:[%s3 + $0x14] sm:$0xf]
  %v46 = vld [vmem:[%s3 + $0x18] sm:$0xf]
  %v47 = vld [vmem:[%s3 + $0x1c] sm:$0xf]
  %v48 = vld [vmem:[%s3 + $0x20] sm:$0xf]
  %v49 = vld [vmem:[%s3 + $0x24] sm:$0xf]
  %v50 = vld [vmem:[%s3 + $0x28] sm:$0xf]
  %v51 = vld [vmem:[%s3 + $0x2c] sm:$0xf]
  %v52 = vld [vmem:[%s3 + $0x30] sm:$0xf]
  %v53 = vld [vmem:[%s3 + $0x34] sm:$0xf]
  %v54 = vld [vmem:[%s3 + $0x38] sm:$0xf]
  %v55 = vld [vmem:[%s3 + $0x3c] sm:$0xf]
  %v56 = vld [vmem:[%s4] sm:$0x1]
  %v58 = vperm.slane %v56, 0
  %v76 = vunpack.c.l.b16 %v40
  %v77 = vunpack.c.l.b16 %v41
  %v78 = vunpack.c.l.b16 %v42
  %v79 = vunpack.c.l.b16 %v43
  %v80 = vunpack.c.l.b16 %v44
  %v81 = vunpack.c.l.b16 %v45
  %v82 = vunpack.c.l.b16 %v46
  %v83 = vunpack.c.l.b16 %v47
  %v84 = vunpack.c.l.b16 %v48
  %v85 = vunpack.c.l.b16 %v49
  %v86 = vunpack.c.l.b16 %v50
  %v87 = vunpack.c.l.b16 %v51
  %v88 = vunpack.c.l.b16 %v52
  %v89 = vunpack.c.l.b16 %v53
  %v90 = vunpack.c.l.b16 %v54
  %v91 = vunpack.c.l.b16 %v55
  %v92 = vpack.c.b16 %v77, %v76
  %v93 = vpack.c.b16 %v79, %v78
  %v94 = vpack.c.b16 %v81, %v80
  %v95 = vpack.c.b16 %v83, %v82
  %v96 = vpack.c.b16 %v85, %v84
  %v97 = vpack.c.b16 %v87, %v86
  %v98 = vpack.c.b16 %v89, %v88
  %v99 = vpack.c.b16 %v91, %v90
  %108 = vmatpush.bf16.msra.mxu0 %v99
  %109 = vmatpush.bf16.msra.mxu0 %v98
  %110 = vmatpush.bf16.msra.mxu0 %v97
  %111 = vmatpush.bf16.msra.mxu0 %v96
  %112 = vmatpush.bf16.msra.mxu0 %v95
  %113 = vmatpush.bf16.msra.mxu0 %v94
  %114 = vmatpush.bf16.msra.mxu0 %v93
  %115 = vmatpush.bf16.msra.mxu0 %v92
  %116 = vmatmul.bf16.gmra.mxu0 %v39
  %v117 = vpop.f32.mrf.mxu0
  %v118 = vadd.f32 %v58, %v117
  %v119 = vpop.f32.mrf.mxu0
  %120 = vdwg.mxu0
  %v121 = vmax.f32 %v118, 0.0
  %v122 = vpack.c.bf16 %v121, %v121
  %v123 = vld [vmem:[%s5] sm:$0xf]
  %v124 = vld [vmem:[%s5 + $0x4] sm:$0xf]
  %v125 = vld [vmem:[%s5 + $0x8] sm:$0xf]
  %v126 = vld [vmem:[%s5 + $0xc] sm:$0xf]
  %v127 = vld [vmem:[%s5 + $0x10] sm:$0xf]
  %v128 = vld [vmem:[%s5 + $0x14] sm:$0xf]
  %v129 = vld [vmem:[%s5 + $0x18] sm:$0xf]
  %v130 = vld [vmem:[%s5 + $0x1c] sm:$0xf]
  %v131 = vld [vmem:[%s5 + $0x20] sm:$0xf]
  %v132 = vld [vmem:[%s5 + $0x24] sm:$0xf]
  %v133 = vld [vmem:[%s5 + $0x28] sm:$0xf]
  %v134 = vld [vmem:[%s5 + $0x2c] sm:$0xf]
  %v135 = vld [vmem:[%s5 + $0x30] sm:$0xf]
  %v136 = vld [vmem:[%s5 + $0x34] sm:$0xf]
  %v137 = vld [vmem:[%s5 + $0x38] sm:$0xf]
  %v138 = vld [vmem:[%s5 + $0x3c] sm:$0xf]
  %v139 = vld [vmem:[%s6] sm:$0x1]
  %v141 = vperm.slane %v139, 0
  %v159 = vunpack.c.l.b16 %v123
  %v160 = vunpack.c.l.b16 %v124
  %v161 = vunpack.c.l.b16 %v125
  %v162 = vunpack.c.l.b16 %v126
  %v163 = vunpack.c.l.b16 %v127
  %v164 = vunpack.c.l.b16 %v128
  %v165 = vunpack.c.l.b16 %v129
  %v166 = vunpack.c.l.b16 %v130
  %v167 = vunpack.c.l.b16 %v131
  %v168 = vunpack.c.l.b16 %v132
  %v169 = vunpack.c.l.b16 %v133
  %v170 = vunpack.c.l.b16 %v134
  %v171 = vunpack.c.l.b16 %v135
  %v172 = vunpack.c.l.b16 %v136
  %v173 = vunpack.c.l.b16 %v137
  %v174 = vunpack.c.l.b16 %v138
  %v175 = vpack.c.b16 %v160, %v159
  %v176 = vpack.c.b16 %v162, %v161
  %v177 = vpack.c.b16 %v164, %v163
  %v178 = vpack.c.b16 %v166, %v165
  %v179 = vpack.c.b16 %v168, %v167
  %v180 = vpack.c.b16 %v170, %v169
  %v181 = vpack.c.b16 %v172, %v171
  %v182 = vpack.c.b16 %v174, %v173
  %191 = vmatpush.bf16.msra.mxu0 %v182
  %192 = vmatpush.bf16.msra.mxu0 %v181
  %193 = vmatpush.bf16.msra.mxu0 %v180
  %194 = vmatpush.bf16.msra.mxu0 %v179
  %195 = vmatpush.bf16.msra.mxu0 %v178
  %196 = vmatpush.bf16.msra.mxu0 %v177
  %197 = vmatpush.bf16.msra.mxu0 %v176
  %198 = vmatpush.bf16.msra.mxu0 %v175
  %199 = vmatmul.bf16.gmra.mxu0 %v122
  %v200 = vpop.f32.mrf.mxu0
  %v201 = vadd.f32 %v141, %v200
  %v202 = vpop.f32.mrf.mxu0
  %203 = vdwg.mxu0
  %v204 = vmax.f32 %v201, 0.0
  %v205 = vld [vmem:[%s7] sm:$0x1]
  %v207 = vperm.slane %v205, 0
  %v209 = vmul.f32 %v204, %v207
  %vm210 = vcmask 523264
  %v211 = vsel %vm210, %v209, 0.0
  %212 = vadd.xlane.f32.xlu0 %v211
  %v213 = vpop.xlane.xlu0 %212
  %v214 = vld [vmem:[#allocation2] sm:$0x1]
  %v216 = vperm.slane %v214, 0
  %v218 = vadd.f32 %v213, %v216
  %v219 = vsub.f32 0.0, %v218
  %v220 = vmul.f32 %v219, 1.442695
  %v221 = vpow.pop %v220
  %v222 = vadd.f32 %v221, 1.0
  %v223 = vrcp.pop %v222
  %v224 = vmul.f32 %v222, %v223
  %v225 = vsub.f32 1.0, %v224
  %v226 = vmul.f32 %v223, %v225
  %v227 = vadd.f32 %v223, %v226
  %vm228 = vweird.f32 %v222
  %vm229 = vweird.f32 %v223
  %vm230 = vmor %vm228, %vm229
  %v231 = vsel %vm230, %v223, %v227
  %v232 = vand.u32 2147483647, %v222
  %vm233 = vcmp.eq.f32.partialorder %v232, 8.507059e+37
  %v234 = vand.u32 %v222, 2147483648
  %v235 = vor.u32 1.1754944e-38, %v234
  %v236 = vsel %vm233, %v235, %v231
  %v237 = vmul.f32 1.0, %v236
  %vm238 = vcmask 7168
  %239 = vst.msk [vmem:[%s9] sm:$0xff] %vm238, %v237
  // Predicated region
  $region38: #{forward.7} parent=0 // pred_check
    _
  $region39: #{forward.7} parent=0 // pred_check_branch
    %241 = sbr.rel (0) target = $region41
  $region40: #{forward.7} parent=0 // pred_region
    _
  $region41: #{forward.7} parent=0 // pred_fallthru
    _
  // Predicated region
  $region42: #{forward.7} parent=0 // pred_check
    _
  $region43: #{forward.7} parent=0 // pred_check_branch
    %243 = sbr.rel (0) target = $region45
  $region44: #{forward.7} parent=0 // pred_region
    _
  $region45: #{forward.7} parent=0 // pred_fallthru
    _

</llo_original>
